<compile_context>
chip_gen: v5e
topology: v5e:2x2
jax: 0.10.0
libtpu: 0.0.40
codegen_flags: <defaults>
</compile_context>

<pallas_src>
import functools

import jax
import jax.numpy as jnp
from jax.experimental import pallas as pl
from jax.experimental.pallas import tpu as pltpu

# ---------------------------------------------------------------- dimensions
B = 8                         # demo batch
C, H, W = 4, 8, 4
REPR_DIM = C * H * W          # 128
FEATURE_DIM = 128             # cfg.feature_dim
HIDDEN_DIM = 128              # cfg.hidden_dim (scaled down from 1024 for demo)
PROP_DIM = 8
ACTION_DIM = 8
LN_EPS = 1e-5

OUT_PAD = 128                 # ACTION_DIM lane-padded to 128 (lane-dense stores)
PROP_PAD = 16                 # prop lane-padded to 16 (bf16 sublane tile for W1p)
VEC_PAD = max(FEATURE_DIM, HIDDEN_DIM, OUT_PAD)   # 128
N_VEC_ROWS = 16               # 10 used rows, padded to a sublane multiple
B_TILE_MAX = 256              # fills v6e/v7x 256x256 MXU; fine on v5e (2 passes)

# Row offsets of each weight inside the stacked bf16 operand (all multiples of
# 16 so every static ref slice is bf16-tile aligned).
W0_OFF = 0
W1F_OFF = W0_OFF + REPR_DIM        # 128
W1P_OFF = W1F_OFF + FEATURE_DIM    # 256
W2_OFF = W1P_OFF + PROP_PAD        # 272
W3_OFF = W2_OFF + HIDDEN_DIM       # 400
W_STACK_ROWS = W3_OFF + HIDDEN_DIM  # 528


def _round_up(x, m):
    return -(-x // m) * m


def _cdiv(a, b):
    return -(-a // b)


@functools.lru_cache(maxsize=1)
def _num_tensorcores_per_chip():
    """v7x has 2 TensorCores per chip; v5e/v6e have 1.  Trace-time only."""
    try:
        kind = jax.devices()[0].device_kind.lower()
    except Exception:  # pragma: no cover - CPU/interpret fallback
        return 1
    return 2 if ("v7" in kind or "7x" in kind) else 1


# ------------------------------------------------------------------- kernel
def _layernorm(x, gamma, beta):
    # biased variance, exactly like nn.LayerNorm
    m = jnp.mean(x, axis=-1, keepdims=True)
    v = jnp.mean((x - m) ** 2, axis=-1, keepdims=True)
    return (x - m) * jax.lax.rsqrt(v + LN_EPS) * gamma + beta


def actor_kernel(feat_ref, prop_ref, w_ref, vec_ref, mu_ref):
    f32 = jnp.float32
    bf16 = jnp.bfloat16

    # One load of the consolidated parameter-vector stack (2 f32 vregs), then
    # value slices (no further vector loads).
    vecs = vec_ref[...]                         # (16, 128) f32
    b0, g0, be0 = vecs[0:1], vecs[1:2], vecs[2:3]
    b1, g1, be1 = vecs[3:4], vecs[4:5], vecs[5:6]
    b2, g2, be2 = vecs[6:7], vecs[7:8], vecs[8:9]
    b3 = vecs[9:10]                             # zero past ACTION_DIM

    # Static, 16-aligned row slices into the single stacked bf16 weight operand.
    w0 = w_ref[W0_OFF:W0_OFF + REPR_DIM, :]
    w1f = w_ref[W1F_OFF:W1F_OFF + FEATURE_DIM, :]
    w1p = w_ref[W1P_OFF:W1P_OFF + PROP_PAD, :]   # rows >= PROP_DIM are zero
    w2 = w_ref[W2_OFF:W2_OFF + HIDDEN_DIM, :]
    w3 = w_ref[W3_OFF:W3_OFF + HIDDEN_DIM, :]    # lanes >= ACTION_DIM are zero

    feat = feat_ref[...]                         # (BT, REPR_DIM) bf16
    prop = prop_ref[...]                         # (BT, PROP_PAD) bf16

    # compress: Linear -> LayerNorm -> Dropout(0, identity) -> ReLU  (f32 math)
    h0 = jnp.dot(feat, w0, preferred_element_type=f32) + b0
    h0 = jnp.maximum(_layernorm(h0, g0, be0), 0.0)

    # policy layer 1: concat([h0, prop]) @ W1 == h0 @ W1_feat + prop @ W1_prop
    h1 = jnp.dot(h0.astype(bf16), w1f, preferred_element_type=f32)
    h1 = h1 + (jnp.dot(prop, w1p, preferred_element_type=f32) + b1)
    h1 = jnp.maximum(_layernorm(h1, g1, be1), 0.0)

    # policy layer 2
    h2 = jnp.dot(h1.astype(bf16), w2, preferred_element_type=f32) + b2
    h2 = jnp.maximum(_layernorm(h2, g2, be2), 0.0)

    # output head + Tanh (w3/b3 zero-padded to OUT_PAD lanes -> tanh(0)=0 there)
    mu = jnp.tanh(jnp.dot(h2.astype(bf16), w3, preferred_element_type=f32) + b3)
    mu_ref[...] = mu.astype(mu_ref.dtype)


# ------------------------------------------------------------------ wrapper
def _pick_batch_tiling(Bb, num_cores):
    """Static (trace-time) choice of batch tile and padded batch size."""
    padded = _round_up(Bb, 16)          # bf16 packs 16 rows per sublane group
    if padded > B_TILE_MAX:
        n_blocks = _cdiv(padded, B_TILE_MAX)
        b_tile = _round_up(_cdiv(padded, n_blocks), 16)   # pad bounded by 1 tile
        return b_tile, n_blocks * b_tile
    if num_cores >= 2 and padded >= 32:
        # >=2 "parallel" blocks so both v7x TensorCores get work.
        b_tile = _round_up(_cdiv(padded, 2), 16)
        return b_tile, 2 * b_tile
    # Single-TC chips (v5e/v6e), or tiny batches: one grid block, no extra
    # per-step pipeline overhead.
    return padded, padded


def _cost_estimate(Bp):
    flops = 2 * Bp * (REPR_DIM * FEATURE_DIM
                      + FEATURE_DIM * HIDDEN_DIM
                      + PROP_PAD * HIDDEN_DIM
                      + HIDDEN_DIM * HIDDEN_DIM
                      + HIDDEN_DIM * OUT_PAD)
    transcendentals = Bp * (OUT_PAD + 3)          # tanh row + 3 rsqrt per row
    bytes_accessed = (W_STACK_ROWS * 128 * 2
                      + N_VEC_ROWS * VEC_PAD * 4
                      + Bp * REPR_DIM * 2
                      + Bp * PROP_PAD * 2
                      + Bp * OUT_PAD * 4)
    return pl.CostEstimate(flops=flops, transcendentals=transcendentals,
                           bytes_accessed=bytes_accessed)


def prepare_params(params):
    """One-time (init) parameter preparation: bf16 cast, W1 split, padding,
    and consolidation into a single stacked weight operand + vec stack.
    Call once; do NOT put this in the per-step path."""
    (w0, b0, g0, be0, w1, b1, g1, be1, w2, b2, g2, be2, w3, b3) = params

    w1f = w1[:FEATURE_DIM, :]
    w1p = jnp.zeros((PROP_PAD, HIDDEN_DIM), jnp.float32)
    w1p = w1p.at[:PROP_DIM, :].set(w1[FEATURE_DIM:, :])
    w3p = jnp.zeros((HIDDEN_DIM, OUT_PAD), jnp.float32)
    w3p = w3p.at[:, :ACTION_DIM].set(w3)
    w_stack = jnp.concatenate([w0, w1f, w1p, w2, w3p], axis=0).astype(jnp.bfloat16)
    assert w_stack.shape == (W_STACK_ROWS, 128)

    def pad_row(v):
        v = v.reshape(1, -1).astype(jnp.float32)
        return jnp.pad(v, ((0, 0), (0, VEC_PAD - v.shape[1])))

    vec = jnp.concatenate(
        [pad_row(v) for v in (b0, g0, be0, b1, g1, be1, b2, g2, be2, b3)], axis=0)
    vec = jnp.pad(vec, ((0, N_VEC_ROWS - vec.shape[0]), (0, 0)))
    return jax.device_put(w_stack), jax.device_put(vec)


@jax.jit
def actor_forward(obs_feat, obs_prop, w_stack, vec, std):
    """Returns (mu, std_array) — the parameters of TruncatedNormal(mu, std)."""
    Bb = obs_feat.shape[0]

    # torch.flatten(1, -1) + bf16 cast (halves activation DMA bytes).
    feat = obs_feat.reshape(Bb, -1).astype(jnp.bfloat16)
    prop = obs_prop.astype(jnp.bfloat16)

    # Batch tiling: zero-pad to a 16-aligned tile multiple so no rows drop.
    b_tile, Bp = _pick_batch_tiling(Bb, _num_tensorcores_per_chip())
    if Bp != Bb:
        feat = jnp.pad(feat, ((0, Bp - Bb), (0, 0)))
    prop = jnp.pad(prop, ((0, Bp - Bb), (0, PROP_PAD - PROP_DIM)))

    grid = (Bp // b_tile,)
    row = lambda i: (i, 0)      # batch-tiled operands
    rep = lambda i: (0, 0)      # replicated weights / param stack

    mu_pad = pl.pallas_call(
        actor_kernel,
        out_shape=jax.ShapeDtypeStruct((Bp, OUT_PAD), jnp.float32),
        grid_spec=pltpu.PrefetchScalarGridSpec(
            num_scalar_prefetch=0,
            grid=grid,
            in_specs=[
                pl.BlockSpec((b_tile, REPR_DIM), row),
                pl.BlockSpec((b_tile, PROP_PAD), row),
                pl.BlockSpec((W_STACK_ROWS, 128), rep),     # single stacked weight DMA
                pl.BlockSpec((N_VEC_ROWS, VEC_PAD), rep),   # single bias/LN-vec DMA
            ],
            out_specs=pl.BlockSpec((b_tile, OUT_PAD), row),
        ),
        compiler_params=pltpu.CompilerParams(
            dimension_semantics=("parallel",)),
        cost_estimate=_cost_estimate(Bp),
    )(feat, prop, w_stack, vec)

    mu = mu_pad[:Bb, :ACTION_DIM]

    # TruncatedNormal(mu, std): distribution parameters (glue, plain JAX)
    std_arr = jnp.full_like(mu, std)
    return mu, std_arr


# --------------------------------------------------------------- parameters
def init_params(key):
    ks = jax.random.split(key, 8)

    def lin(k, din, dout, scale):
        kw, kb = jax.random.split(k)
        w = jax.random.normal(kw, (din, dout), jnp.float32) * scale
        b = jax.random.normal(kb, (1, dout), jnp.float32) * 0.01
        return w, b

    def ln(dim):
        return jnp.ones((1, dim), jnp.float32), jnp.zeros((1, dim), jnp.float32)

    # compress
    w0, b0 = lin(ks[0], REPR_DIM, FEATURE_DIM, 0.05)
    g0, be0 = ln(FEATURE_DIM)
    # policy layer 1 (input = feature_dim + prop_dim)
    w1, b1 = lin(ks[1], FEATURE_DIM + PROP_DIM, HIDDEN_DIM, 0.05)
    g1, be1 = ln(HIDDEN_DIM)
    # policy layer 2
    w2, b2 = lin(ks[2], HIDDEN_DIM, HIDDEN_DIM, 0.05)
    g2, be2 = ln(HIDDEN_DIM)
    # output head
    w3, b3 = lin(ks[3], HIDDEN_DIM, ACTION_DIM, 0.05)
    return (w0, b0, g0, be0, w1, b1, g1, be1, w2, b2, g2, be2, w3, b3)


# ----------------------------------------------------------- pure-JAX checks
def actor_reference(obs_feat, obs_prop, params, matmul_dtype):
    """PyTorch-equivalent math; matmul operands cast to `matmul_dtype`,
    f32 accumulation, f32 LayerNorm/ReLU/tanh (mirrors kernel compute path)."""
    (w0, b0, g0, be0, w1, b1, g1, be1, w2, b2, g2, be2, w3, b3) = params
    x = obs_feat.reshape(obs_feat.shape[0], -1)

    def ln(h, g, b):
        m = h.mean(-1, keepdims=True)
        v = ((h - m) ** 2).mean(-1, keepdims=True)
        return (h - m) * jax.lax.rsqrt(v + LN_EPS) * g + b

    cast = lambda a: a.astype(matmul_dtype)
    mm = lambda a, w: jnp.dot(cast(a), cast(w), preferred_element_type=jnp.float32)

    h0 = jax.nn.relu(ln(mm(x, w0) + b0, g0, be0))
    h1 = jax.nn.relu(ln(mm(h0, w1[:FEATURE_DIM]) + mm(obs_prop, w1[FEATURE_DIM:]) + b1,
                        g1, be1))
    h2 = jax.nn.relu(ln(mm(h1, w2) + b2, g2, be2))
    return jnp.tanh(mm(h2, w3) + b3)


# -------------------------------------------------------------------- main
if __name__ == "__main__":
    key = jax.random.PRNGKey(0)
    k_feat, k_prop, k_param = jax.random.split(key, 3)

    obs_feat = jax.random.normal(k_feat, (B, C, H, W), jnp.float32)   # NCHW
    obs_prop = jax.random.normal(k_prop, (B, PROP_DIM), jnp.float32)
    params = init_params(k_param)
    std = 0.1

    # One-time parameter preparation (hoisted out of the per-call path).
    w_stack, vec = prepare_params(params)

    mu, std_arr = actor_forward(obs_feat, obs_prop, w_stack, vec, std)
    mu = jax.block_until_ready(mu)
    std_arr = jax.block_until_ready(std_arr)
    assert mu.shape == (B, ACTION_DIM)
    assert std_arr.shape == (B, ACTION_DIM)

    # Tight check against the same bf16-matmul / f32-accumulate compute path.
    mu_ref_bf16 = actor_reference(obs_feat, obs_prop, params, jnp.bfloat16)
    assert jnp.allclose(mu, mu_ref_bf16, atol=5e-3, rtol=5e-3), "mismatch vs bf16 reference"

    # Looser check against full-f32 PyTorch-equivalent math (bf16 weight quantization).
    mu_ref_f32 = actor_reference(obs_feat, obs_prop, params, jnp.float32)
    assert jnp.allclose(mu, mu_ref_f32, atol=5e-2, rtol=5e-2), "mismatch vs f32 reference"

    # TODO(synk): TruncatedNormal sampling / log_prob and clip_action_norm
    # (max_action_norm<=0 by default) are distribution-object semantics, not
    # kernel compute; we return (mu, std) instead.
    print("KERNEL_OK")
</pallas_src>

<mosaic_0001>
module attributes {stable_mosaic.version = 11 : i64} {
  func.func @actor_kernel(%arg0: i32, %arg1: memref<16x128xbf16, #tpu.memory_space<vmem>>, %arg2: memref<16x16xbf16, #tpu.memory_space<vmem>>, %arg3: memref<528x128xbf16, #tpu.memory_space<vmem>>, %arg4: memref<16x128xf32, #tpu.memory_space<vmem>>, %arg5: memref<16x128xf32, #tpu.memory_space<vmem>>) attributes {dimension_semantics = [#tpu.dimension_semantics<parallel>], iteration_bounds = array<i64: 1>, scalar_prefetch = 0 : i64, scratch_operands = 0 : i64, tpu.core_type = #tpu.core_type<tc>, window_params = [{transform_indices = @transform_0, window_bounds = array<i64: 16, 128>}, {transform_indices = @transform_1, window_bounds = array<i64: 16, 16>}, {pipeline_mode = #tpu.pipeline_mode<synchronous>, transform_indices = @transform_2, window_bounds = array<i64: 528, 128>}, {pipeline_mode = #tpu.pipeline_mode<synchronous>, transform_indices = @transform_3, window_bounds = array<i64: 16, 128>}, {transform_indices = @transform_4, window_bounds = array<i64: 16, 128>}]} {
    %c0 = arith.constant 0 : index
    %c0_0 = arith.constant 0 : index
    %0 = vector.load %arg4[%c0, %c0_0] : memref<16x128xf32, #tpu.memory_space<vmem>>, vector<16x128xf32>
    %1 = vector.extract_strided_slice %0 {offsets = [0, 0], sizes = [1, 128], strides = [1, 1]} : vector<16x128xf32> to vector<1x128xf32>
    %2 = vector.extract_strided_slice %0 {offsets = [1, 0], sizes = [1, 128], strides = [1, 1]} : vector<16x128xf32> to vector<1x128xf32>
    %3 = vector.extract_strided_slice %0 {offsets = [2, 0], sizes = [1, 128], strides = [1, 1]} : vector<16x128xf32> to vector<1x128xf32>
    %4 = vector.extract_strided_slice %0 {offsets = [3, 0], sizes = [1, 128], strides = [1, 1]} : vector<16x128xf32> to vector<1x128xf32>
    %5 = vector.extract_strided_slice %0 {offsets = [4, 0], sizes = [1, 128], strides = [1, 1]} : vector<16x128xf32> to vector<1x128xf32>
    %6 = vector.extract_strided_slice %0 {offsets = [5, 0], sizes = [1, 128], strides = [1, 1]} : vector<16x128xf32> to vector<1x128xf32>
    %7 = vector.extract_strided_slice %0 {offsets = [6, 0], sizes = [1, 128], strides = [1, 1]} : vector<16x128xf32> to vector<1x128xf32>
    %8 = vector.extract_strided_slice %0 {offsets = [7, 0], sizes = [1, 128], strides = [1, 1]} : vector<16x128xf32> to vector<1x128xf32>
    %9 = vector.extract_strided_slice %0 {offsets = [8, 0], sizes = [1, 128], strides = [1, 1]} : vector<16x128xf32> to vector<1x128xf32>
    %10 = vector.extract_strided_slice %0 {offsets = [9, 0], sizes = [1, 128], strides = [1, 1]} : vector<16x128xf32> to vector<1x128xf32>
    %c0_1 = arith.constant 0 : index
    %c0_2 = arith.constant 0 : index
    %11 = vector.load %arg3[%c0_1, %c0_2] : memref<528x128xbf16, #tpu.memory_space<vmem>>, vector<128x128xbf16>
    %c128 = arith.constant 128 : index
    %c0_3 = arith.constant 0 : index
    %12 = vector.load %arg3[%c128, %c0_3] : memref<528x128xbf16, #tpu.memory_space<vmem>>, vector<128x128xbf16>
    %c256 = arith.constant 256 : index
    %c0_4 = arith.constant 0 : index
    %13 = vector.load %arg3[%c256, %c0_4] : memref<528x128xbf16, #tpu.memory_space<vmem>>, vector<16x128xbf16>
    %c272 = arith.constant 272 : index
    %c0_5 = arith.constant 0 : index
    %14 = vector.load %arg3[%c272, %c0_5] : memref<528x128xbf16, #tpu.memory_space<vmem>>, vector<128x128xbf16>
    %c400 = arith.constant 400 : index
    %c0_6 = arith.constant 0 : index
    %15 = vector.load %arg3[%c400, %c0_6] : memref<528x128xbf16, #tpu.memory_space<vmem>>, vector<128x128xbf16>
    %c0_7 = arith.constant 0 : index
    %c0_8 = arith.constant 0 : index
    %16 = vector.load %arg1[%c0_7, %c0_8] : memref<16x128xbf16, #tpu.memory_space<vmem>>, vector<16x128xbf16>
    %c0_9 = arith.constant 0 : index
    %c0_10 = arith.constant 0 : index
    %17 = vector.load %arg2[%c0_9, %c0_10] : memref<16x16xbf16, #tpu.memory_space<vmem>>, vector<16x16xbf16>
    %cst = arith.constant dense<0.000000e+00> : vector<16x128xf32>
    %18 = tpu.matmul %16, %11, %cst {dimension_numbers = #tpu.dot_dimension_numbers<[1], [0], [0], [1], [0, 0, 1, 1], [], []>} : vector<16x128xbf16>, vector<128x128xbf16>, vector<16x128xf32> -> vector<16x128xf32>
    %19 = vector.broadcast %1 : vector<1x128xf32> to vector<16x128xf32>
    %20 = arith.addf %18, %19 : vector<16x128xf32>
    %cst_11 = arith.constant dense<0.000000e+00> : vector<16xf32>
    %21 = vector.multi_reduction <add>, %20, %cst_11 [1] : vector<16x128xf32> to vector<16xf32>
    %22 = vector.shape_cast %21 : vector<16xf32> to vector<16x1xf32>
    %cst_12 = arith.constant 1.280000e+02 : f32
    %23 = vector.broadcast %cst_12 : f32 to vector<16x1xf32>
    %24 = arith.divf %22, %23 : vector<16x1xf32>
    %25 = vector.broadcast %24 : vector<16x1xf32> to vector<16x128xf32>
    %26 = arith.subf %20, %25 : vector<16x128xf32>
    %27 = arith.mulf %26, %26 : vector<16x128xf32>
    %cst_13 = arith.constant dense<0.000000e+00> : vector<16xf32>
    %28 = vector.multi_reduction <add>, %27, %cst_13 [1] : vector<16x128xf32> to vector<16xf32>
    %29 = vector.shape_cast %28 : vector<16xf32> to vector<16x1xf32>
    %cst_14 = arith.constant 1.280000e+02 : f32
    %30 = vector.broadcast %cst_14 : f32 to vector<16x1xf32>
    %31 = arith.divf %29, %30 : vector<16x1xf32>
    %32 = vector.broadcast %24 : vector<16x1xf32> to vector<16x128xf32>
    %33 = arith.subf %20, %32 : vector<16x128xf32>
    %cst_15 = arith.constant 9.99999974E-6 : f32
    %34 = vector.broadcast %cst_15 : f32 to vector<16x1xf32>
    %35 = arith.addf %31, %34 : vector<16x1xf32>
    %36 = math.rsqrt %35 : vector<16x1xf32>
    %37 = vector.broadcast %36 : vector<16x1xf32> to vector<16x128xf32>
    %38 = arith.mulf %33, %37 : vector<16x128xf32>
    %39 = vector.broadcast %2 : vector<1x128xf32> to vector<16x128xf32>
    %40 = arith.mulf %38, %39 : vector<16x128xf32>
    %41 = vector.broadcast %3 : vector<1x128xf32> to vector<16x128xf32>
    %42 = arith.addf %40, %41 : vector<16x128xf32>
    %cst_16 = arith.constant 0.000000e+00 : f32
    %43 = vector.broadcast %cst_16 : f32 to vector<16x128xf32>
    %44 = arith.maximumf %42, %43 : vector<16x128xf32>
    %45 = arith.truncf %44 : vector<16x128xf32> to vector<16x128xbf16>
    %cst_17 = arith.constant dense<0.000000e+00> : vector<16x128xf32>
    %46 = tpu.matmul %45, %12, %cst_17 {dimension_numbers = #tpu.dot_dimension_numbers<[1], [0], [0], [1], [0, 0, 1, 1], [], []>} : vector<16x128xbf16>, vector<128x128xbf16>, vector<16x128xf32> -> vector<16x128xf32>
    %cst_18 = arith.constant dense<0.000000e+00> : vector<16x128xf32>
    %47 = tpu.matmul %17, %13, %cst_18 {dimension_numbers = #tpu.dot_dimension_numbers<[1], [0], [0], [1], [0, 0, 1, 1], [], []>} : vector<16x16xbf16>, vector<16x128xbf16>, vector<16x128xf32> -> vector<16x128xf32>
    %48 = vector.broadcast %4 : vector<1x128xf32> to vector<16x128xf32>
    %49 = arith.addf %47, %48 : vector<16x128xf32>
    %50 = arith.addf %46, %49 : vector<16x128xf32>
    %cst_19 = arith.constant dense<0.000000e+00> : vector<16xf32>
    %51 = vector.multi_reduction <add>, %50, %cst_19 [1] : vector<16x128xf32> to vector<16xf32>
    %52 = vector.shape_cast %51 : vector<16xf32> to vector<16x1xf32>
    %cst_20 = arith.constant 1.280000e+02 : f32
    %53 = vector.broadcast %cst_20 : f32 to vector<16x1xf32>
    %54 = arith.divf %52, %53 : vector<16x1xf32>
    %55 = vector.broadcast %54 : vector<16x1xf32> to vector<16x128xf32>
    %56 = arith.subf %50, %55 : vector<16x128xf32>
    %57 = arith.mulf %56, %56 : vector<16x128xf32>
    %cst_21 = arith.constant dense<0.000000e+00> : vector<16xf32>
    %58 = vector.multi_reduction <add>, %57, %cst_21 [1] : vector<16x128xf32> to vector<16xf32>
    %59 = vector.shape_cast %58 : vector<16xf32> to vector<16x1xf32>
    %cst_22 = arith.constant 1.280000e+02 : f32
    %60 = vector.broadcast %cst_22 : f32 to vector<16x1xf32>
    %61 = arith.divf %59, %60 : vector<16x1xf32>
    %62 = vector.broadcast %54 : vector<16x1xf32> to vector<16x128xf32>
    %63 = arith.subf %50, %62 : vector<16x128xf32>
    %cst_23 = arith.constant 9.99999974E-6 : f32
    %64 = vector.broadcast %cst_23 : f32 to vector<16x1xf32>
    %65 = arith.addf %61, %64 : vector<16x1xf32>
    %66 = math.rsqrt %65 : vector<16x1xf32>
    %67 = vector.broadcast %66 : vector<16x1xf32> to vector<16x128xf32>
    %68 = arith.mulf %63, %67 : vector<16x128xf32>
    %69 = vector.broadcast %5 : vector<1x128xf32> to vector<16x128xf32>
    %70 = arith.mulf %68, %69 : vector<16x128xf32>
    %71 = vector.broadcast %6 : vector<1x128xf32> to vector<16x128xf32>
    %72 = arith.addf %70, %71 : vector<16x128xf32>
    %cst_24 = arith.constant 0.000000e+00 : f32
    %73 = vector.broadcast %cst_24 : f32 to vector<16x128xf32>
    %74 = arith.maximumf %72, %73 : vector<16x128xf32>
    %75 = arith.truncf %74 : vector<16x128xf32> to vector<16x128xbf16>
    %cst_25 = arith.constant dense<0.000000e+00> : vector<16x128xf32>
    %76 = tpu.matmul %75, %14, %cst_25 {dimension_numbers = #tpu.dot_dimension_numbers<[1], [0], [0], [1], [0, 0, 1, 1], [], []>} : vector<16x128xbf16>, vector<128x128xbf16>, vector<16x128xf32> -> vector<16x128xf32>
    %77 = vector.broadcast %7 : vector<1x128xf32> to vector<16x128xf32>
    %78 = arith.addf %76, %77 : vector<16x128xf32>
    %cst_26 = arith.constant dense<0.000000e+00> : vector<16xf32>
    %79 = vector.multi_reduction <add>, %78, %cst_26 [1] : vector<16x128xf32> to vector<16xf32>
    %80 = vector.shape_cast %79 : vector<16xf32> to vector<16x1xf32>
    %cst_27 = arith.constant 1.280000e+02 : f32
    %81 = vector.broadcast %cst_27 : f32 to vector<16x1xf32>
    %82 = arith.divf %80, %81 : vector<16x1xf32>
    %83 = vector.broadcast %82 : vector<16x1xf32> to vector<16x128xf32>
    %84 = arith.subf %78, %83 : vector<16x128xf32>
    %85 = arith.mulf %84, %84 : vector<16x128xf32>
    %cst_28 = arith.constant dense<0.000000e+00> : vector<16xf32>
    %86 = vector.multi_reduction <add>, %85, %cst_28 [1] : vector<16x128xf32> to vector<16xf32>
    %87 = vector.shape_cast %86 : vector<16xf32> to vector<16x1xf32>
    %cst_29 = arith.constant 1.280000e+02 : f32
    %88 = vector.broadcast %cst_29 : f32 to vector<16x1xf32>
    %89 = arith.divf %87, %88 : vector<16x1xf32>
    %90 = vector.broadcast %82 : vector<16x1xf32> to vector<16x128xf32>
    %91 = arith.subf %78, %90 : vector<16x128xf32>
    %cst_30 = arith.constant 9.99999974E-6 : f32
    %92 = vector.broadcast %cst_30 : f32 to vector<16x1xf32>
    %93 = arith.addf %89, %92 : vector<16x1xf32>
    %94 = math.rsqrt %93 : vector<16x1xf32>
    %95 = vector.broadcast %94 : vector<16x1xf32> to vector<16x128xf32>
    %96 = arith.mulf %91, %95 : vector<16x128xf32>
    %97 = vector.broadcast %8 : vector<1x128xf32> to vector<16x128xf32>
    %98 = arith.mulf %96, %97 : vector<16x128xf32>
    %99 = vector.broadcast %9 : vector<1x128xf32> to vector<16x128xf32>
    %100 = arith.addf %98, %99 : vector<16x128xf32>
    %cst_31 = arith.constant 0.000000e+00 : f32
    %101 = vector.broadcast %cst_31 : f32 to vector<16x128xf32>
    %102 = arith.maximumf %100, %101 : vector<16x128xf32>
    %103 = arith.truncf %102 : vector<16x128xf32> to vector<16x128xbf16>
    %cst_32 = arith.constant dense<0.000000e+00> : vector<16x128xf32>
    %104 = tpu.matmul %103, %15, %cst_32 {dimension_numbers = #tpu.dot_dimension_numbers<[1], [0], [0], [1], [0, 0, 1, 1], [], []>} : vector<16x128xbf16>, vector<128x128xbf16>, vector<16x128xf32> -> vector<16x128xf32>
    %105 = vector.broadcast %10 : vector<1x128xf32> to vector<16x128xf32>
    %106 = arith.addf %104, %105 : vector<16x128xf32>
    %107 = math.tanh %106 : vector<16x128xf32>
    %c0_33 = arith.constant 0 : index
    %c0_34 = arith.constant 0 : index
    %108 = vector.load %arg5[%c0_33, %c0_34] : memref<16x128xf32, #tpu.memory_space<vmem>>, vector<16x128xf32>
    tpu.vector_store %arg5[%c0_33, %c0_34], %107 {strides = array<i32>} : memref<16x128xf32, #tpu.memory_space<vmem>>, vector<16x128xf32>,
    return
  }
  func.func @transform_0(%arg0: i32) -> (i32, i32) {
    %c0_i32 = arith.constant 0 : i32
    %c0_i32_0 = arith.constant 0 : i32
    return %arg0, %c0_i32 : i32, i32
  }
  func.func @transform_1(%arg0: i32) -> (i32, i32) {
    %c0_i32 = arith.constant 0 : i32
    %c0_i32_0 = arith.constant 0 : i32
    return %arg0, %c0_i32 : i32, i32
  }
  func.func @transform_2(%arg0: i32) -> (i32, i32) {
    %c0_i32 = arith.constant 0 : i32
    %c0_i32_0 = arith.constant 0 : i32
    %c0_i32_1 = arith.constant 0 : i32
    return %c0_i32, %c0_i32_0 : i32, i32
  }
  func.func @transform_3(%arg0: i32) -> (i32, i32) {
    %c0_i32 = arith.constant 0 : i32
    %c0_i32_0 = arith.constant 0 : i32
    %c0_i32_1 = arith.constant 0 : i32
    return %c0_i32, %c0_i32_0 : i32, i32
  }
  func.func @transform_4(%arg0: i32) -> (i32, i32) {
    %c0_i32 = arith.constant 0 : i32
    %c0_i32_0 = arith.constant 0 : i32
    return %arg0, %c0_i32 : i32, i32
  }
}

</mosaic_0001>

<llo_original>
// kernel: actor_forward.1
$region0: #{actor_forward.1}
  #allocation0 [shape = 'u32[]', space=smem, size = 0x4, offset = 0x4, fixed_abs, tag = 'smem constant byte address 0x4 - core index']
  #allocation1 [shape = 'u32[72,128]{1,0:T(1,128)}', space=vmem, size = 0x9000, scoped, tag = 'internal scratch']
  %s0 = inlined_call_operand.vmem [shape: bf16[16,128], index: 0, kind: input, shape index: {}]
  %s1 = inlined_call_operand.vmem [shape: bf16[16,16], index: 1, kind: input, shape index: {}]
  %s2 = inlined_call_operand.vmem [shape: bf16[528,128], index: 2, kind: input, shape index: {}]
  %s3 = inlined_call_operand.vmem [shape: f32[16,128], index: 3, kind: input, shape index: {}]
  %s4 = inlined_call_operand.vmem [shape: f32[16,128], index: 4, kind: output, shape index: {}]
  %s5 = sld [smem:[#allocation0]]
  $region26: #{actor_forward.1} parent=0
    _
  %s7 = ssub.s32 1, %s5
  %s8 = scalar_select 0, %s7, %s5
  // Predicated region
  $region2: #{actor_forward.1} parent=0 // pred_check
    _
  $region3: #{actor_forward.1} parent=0 // pred_check_branch
    %10 = sbr.rel (0) target = $region5
  $region4: #{actor_forward.1} parent=0 // pred_region
    _
  $region5: #{actor_forward.1} parent=0 // pred_fallthru
    _
  // Predicated region
  $region6: #{actor_forward.1} parent=0 // pred_check
    _
  $region7: #{actor_forward.1} parent=0 // pred_check_branch
    %12 = sbr.rel (0) target = $region9
  $region8: #{actor_forward.1} parent=0 // pred_region
    _
  $region9: #{actor_forward.1} parent=0 // pred_fallthru
    _
  // Predicated region
  $region10: #{actor_forward.1} parent=0 // pred_check
    _
  $region11: #{actor_forward.1} parent=0 // pred_check_branch
    %14 = sbr.rel (0) target = $region13
  $region12: #{actor_forward.1} parent=0 // pred_region
    _
  $region13: #{actor_forward.1} parent=0 // pred_fallthru
    _
  // Predicated region
  $region14: #{actor_forward.1} parent=0 // pred_check
    _
  $region15: #{actor_forward.1} parent=0 // pred_check_branch
    %16 = sbr.rel (0) target = $region17
  $region16: #{actor_forward.1} parent=0 // pred_region
    _
  $region17: #{actor_forward.1} parent=0 // pred_fallthru
    _
  %v18 = vld [vmem:[%s3] sm:$0xff]
  %v19 = vld [vmem:[%s3 + $0x8] sm:$0xff]
  %v20 = vld [vmem:[%s2] sm:$0xf]
  %v21 = vld [vmem:[%s2 + $0x4] sm:$0xf]
  %v22 = vld [vmem:[%s2 + $0x8] sm:$0xf]
  %v23 = vld [vmem:[%s2 + $0xc] sm:$0xf]
  %v24 = vld [vmem:[%s2 + $0x10] sm:$0xf]
  %v25 = vld [vmem:[%s2 + $0x14] sm:$0xf]
  %v26 = vld [vmem:[%s2 + $0x18] sm:$0xf]
  %v27 = vld [vmem:[%s2 + $0x1c] sm:$0xf]
  %v28 = vld [vmem:[%s2 + $0x20] sm:$0xf]
  %v29 = vld [vmem:[%s2 + $0x24] sm:$0xf]
  %v30 = vld [vmem:[%s2 + $0x28] sm:$0xf]
  %v31 = vld [vmem:[%s2 + $0x2c] sm:$0xf]
  %v32 = vld [vmem:[%s2 + $0x30] sm:$0xf]
  %v33 = vld [vmem:[%s2 + $0x34] sm:$0xf]
  %v34 = vld [vmem:[%s2 + $0x38] sm:$0xf]
  %v35 = vld [vmem:[%s2 + $0x3c] sm:$0xf]
  %v36 = vld [vmem:[%s2 + $0x40] sm:$0xf]
  %v37 = vld [vmem:[%s2 + $0x44] sm:$0xf]
  %v38 = vld [vmem:[%s2 + $0x48] sm:$0xf]
  %v39 = vld [vmem:[%s2 + $0x4c] sm:$0xf]
  %v40 = vld [vmem:[%s2 + $0x50] sm:$0xf]
  %v41 = vld [vmem:[%s2 + $0x54] sm:$0xf]
  %v42 = vld [vmem:[%s2 + $0x58] sm:$0xf]
  %v43 = vld [vmem:[%s2 + $0x5c] sm:$0xf]
  %v44 = vld [vmem:[%s2 + $0x60] sm:$0xf]
  %v45 = vld [vmem:[%s2 + $0x64] sm:$0xf]
  %v46 = vld [vmem:[%s2 + $0x68] sm:$0xf]
  %v47 = vld [vmem:[%s2 + $0x6c] sm:$0xf]
  %v48 = vld [vmem:[%s2 + $0x70] sm:$0xf]
  %v49 = vld [vmem:[%s2 + $0x74] sm:$0xf]
  %v50 = vld [vmem:[%s2 + $0x78] sm:$0xf]
  %v51 = vld [vmem:[%s2 + $0x7c] sm:$0xf]
  %v52 = vld [vmem:[%s2 + $0x80] sm:$0xf]
  %v53 = vld [vmem:[%s2 + $0x84] sm:$0xf]
  %v54 = vld [vmem:[%s2 + $0x88] sm:$0xf]
  %v55 = vld [vmem:[%s2 + $0x8c] sm:$0xf]
  %v56 = vld [vmem:[%s2 + $0x90] sm:$0xf]
  %v57 = vld [vmem:[%s2 + $0x94] sm:$0xf]
  %v58 = vld [vmem:[%s2 + $0x98] sm:$0xf]
  %v59 = vld [vmem:[%s2 + $0x9c] sm:$0xf]
  %v60 = vld [vmem:[%s2 + $0xa0] sm:$0xf]
  %v61 = vld [vmem:[%s2 + $0xa4] sm:$0xf]
  %v62 = vld [vmem:[%s2 + $0xa8] sm:$0xf]
  %v63 = vld [vmem:[%s2 + $0xac] sm:$0xf]
  %v64 = vld [vmem:[%s2 + $0xb0] sm:$0xf]
  %v65 = vld [vmem:[%s2 + $0xb4] sm:$0xf]
  %v66 = vld [vmem:[%s2 + $0xb8] sm:$0xf]
  %v67 = vld [vmem:[%s2 + $0xbc] sm:$0xf]
  %v68 = vld [vmem:[%s2 + $0xc0] sm:$0xf]
  %v69 = vld [vmem:[%s2 + $0xc4] sm:$0xf]
  %v70 = vld [vmem:[%s2 + $0xc8] sm:$0xf]
  %v71 = vld [vmem:[%s2 + $0xcc] sm:$0xf]
  %v72 = vld [vmem:[%s2 + $0xd0] sm:$0xf]
  %v73 = vld [vmem:[%s2 + $0xd4] sm:$0xf]
  %v74 = vld [vmem:[%s2 + $0xd8] sm:$0xf]
  %v75 = vld [vmem:[%s2 + $0xdc] sm:$0xf]
  %v76 = vld [vmem:[%s2 + $0xe0] sm:$0xf]
  %v77 = vld [vmem:[%s2 + $0xe4] sm:$0xf]
  %v78 = vld [vmem:[%s2 + $0xe8] sm:$0xf]
  %v79 = vld [vmem:[%s2 + $0xec] sm:$0xf]
  %v80 = vld [vmem:[%s2 + $0xf0] sm:$0xf]
  %v81 = vld [vmem:[%s2 + $0xf4] sm:$0xf]
  %v82 = vld [vmem:[%s2 + $0xf8] sm:$0xf]
  %v83 = vld [vmem:[%s2 + $0xfc] sm:$0xf]
  %v84 = vld [vmem:[%s2 + $0x100] sm:$0xf]
  %v85 = vld [vmem:[%s2 + $0x104] sm:$0xf]
  %v86 = vld [vmem:[%s0] sm:$0xf]
  %v87 = vld [vmem:[%s0 + $0x4] sm:$0xf]
  %v88 = vld [vmem:[%s1] sm:$0xf]
  %v89 = vld [vmem:[%s1 + $0x4] sm:$0xf]
  %v90 = vperm.slane %v18, 0
  %v93 = vunpack.c.l.b16 %v86
  %v94 = vunpack.c.l.b16 %v87
  %v95 = vpack.c.b16 %v94, %v93
  %v113 = vunpack.c.l.b16 %v20
  %v114 = vunpack.c.l.b16 %v21
  %v115 = vunpack.c.l.b16 %v22
  %v116 = vunpack.c.l.b16 %v23
  %v117 = vunpack.c.l.b16 %v24
  %v118 = vunpack.c.l.b16 %v25
  %v119 = vunpack.c.l.b16 %v26
  %v120 = vunpack.c.l.b16 %v27
  %v121 = vunpack.c.l.b16 %v28
  %v122 = vunpack.c.l.b16 %v29
  %v123 = vunpack.c.l.b16 %v30
  %v124 = vunpack.c.l.b16 %v31
  %v125 = vunpack.c.l.b16 %v32
  %v126 = vunpack.c.l.b16 %v33
  %v127 = vunpack.c.l.b16 %v34
  %v128 = vunpack.c.l.b16 %v35
  %v129 = vpack.c.b16 %v114, %v113
  %v130 = vpack.c.b16 %v116, %v115
  %v131 = vpack.c.b16 %v118, %v117
  %v132 = vpack.c.b16 %v120, %v119
  %v133 = vpack.c.b16 %v122, %v121
  %v134 = vpack.c.b16 %v124, %v123
  %v135 = vpack.c.b16 %v126, %v125
  %v136 = vpack.c.b16 %v128, %v127
  %145 = vmatpush.bf16.msra.mxu0 %v136
  %146 = vmatpush.bf16.msra.mxu0 %v135
  %147 = vmatpush.bf16.msra.mxu0 %v134
  %148 = vmatpush.bf16.msra.mxu0 %v133
  %149 = vmatpush.bf16.msra.mxu0 %v132
  %150 = vmatpush.bf16.msra.mxu0 %v131
  %151 = vmatpush.bf16.msra.mxu0 %v130
  %152 = vmatpush.bf16.msra.mxu0 %v129
  %153 = vmatmul.bf16.gmra.mxu0 %v95
  %v154 = vpop.f32.mrf.mxu0
  %v155 = vadd.f32 %v90, %v154
  %v156 = vpop.f32.mrf.mxu0
  %v157 = vadd.f32 %v90, %v156
  %158 = vdwg.mxu0
  %159 = vadd.xlane.f32.xlu0 %v155
  %v160 = vpop.xlane.xlu0 %159
  %161 = vadd.xlane.f32.xlu0 %v157
  %v162 = vpop.xlane.xlu0 %161
  %v163 = vrcp.pop 128.0
  %v164 = vmul.f32 128.0, %v163
  %v165 = vsub.f32 1.0, %v164
  %v166 = vmul.f32 %v163, %v165
  %v167 = vadd.f32 %v163, %v166
  %vm168 = vweird.f32 %v163
  %v169 = vsel %vm168, %v163, %v167
  %v170 = vmul.f32 %v160, %v169
  %v171 = vmul.f32 %v162, %v169
  %v172 = vsub.f32 %v155, %v170
  %v173 = vsub.f32 %v157, %v171
  %v174 = vmul.f32 %v172, %v172
  %v175 = vmul.f32 %v173, %v173
  %176 = vadd.xlane.f32.xlu0 %v174
  %v177 = vpop.xlane.xlu0 %176
  %178 = vadd.xlane.f32.xlu0 %v175
  %v179 = vpop.xlane.xlu0 %178
  %v180 = vmul.f32 %v177, %v169
  %v181 = vmul.f32 %v179, %v169
  %v182 = vadd.f32 %v180, 1e-05
  %v183 = vadd.f32 %v181, 1e-05
  %v184 = vrsqrt.pop %v182
  %v185 = vmul.f32 %v184, %v182
  %v186 = vmul.f32 %v185, %v184
  %v187 = vmul.f32 0.5, %v186
  %v188 = vsub.f32 1.5, %v187
  %v189 = vmul.f32 %v184, %v188
  %vm190 = vweird.f32 %v182
  %vm191 = vweird.f32 %v184
  %vm192 = vmor %vm190, %vm191
  %v193 = vsel %vm192, %v184, %v189
  %v194 = vrsqrt.pop %v183
  %v195 = vmul.f32 %v194, %v183
  %v196 = vmul.f32 %v195, %v194
  %v197 = vmul.f32 0.5, %v196
  %v198 = vsub.f32 1.5, %v197
  %v199 = vmul.f32 %v194, %v198
  %vm200 = vweird.f32 %v183
  %vm201 = vweird.f32 %v194
  %vm202 = vmor %vm200, %vm201
  %v203 = vsel %vm202, %v194, %v199
  %v204 = vmul.f32 %v172, %v193
  %v205 = vmul.f32 %v173, %v203
  %v206 = vperm.slane %v18, 1
  %v207 = vmul.f32 %v204, %v206
  %v208 = vmul.f32 %v205, %v206
  %v209 = vperm.slane %v18, 2
  %v210 = vadd.f32 %v207, %v209
  %v211 = vadd.f32 %v208, %v209
  %v212 = vmax.f32 %v210, 0.0
  %v213 = vmax.f32 %v211, 0.0
  %v214 = vpack.c.bf16 %v213, %v212
  %v215 = vperm.slane %v18, 3
  %v218 = vunpack.c.l.b16 %v88
  %v219 = vunpack.c.l.b16 %v89
  %v220 = vpack.c.b16 %v219, %v218
  %v223 = vunpack.c.l.b16 %v52
  %v224 = vunpack.c.l.b16 %v53
  %v225 = vpack.c.b16 %v224, %v223
  %vm227 = vcmask 130048
  %v229 = vsel %vm227, %v220, 0
  %231 = vmatpush.bf16.msra.mxu0 0
  %232 = vmatpush.bf16.msra.mxu0 0
  %233 = vmatpush.bf16.msra.mxu0 0
  %234 = vmatpush.bf16.msra.mxu0 0
  %235 = vmatpush.bf16.msra.mxu0 0
  %236 = vmatpush.bf16.msra.mxu0 0
  %237 = vmatpush.bf16.msra.mxu0 0
  %238 = vmatpush.bf16.msra.mxu0 %v225
  %239 = vmatmul.bf16.gmra.mxu0 %v229
  %v240 = vpop.f32.mrf.mxu0
  %v241 = vadd.f32 %v215, %v240
  %v242 = vpop.f32.mrf.mxu0
  %v243 = vadd.f32 %v215, %v242
  %244 = vdwg.mxu0
  %v261 = vunpack.c.l.b16 %v36
  %v262 = vunpack.c.l.b16 %v37
  %v263 = vunpack.c.l.b16 %v38
  %v264 = vunpack.c.l.b16 %v39
  %v265 = vunpack.c.l.b16 %v40
  %v266 = vunpack.c.l.b16 %v41
  %v267 = vunpack.c.l.b16 %v42
  %v268 = vunpack.c.l.b16 %v43
  %v269 = vunpack.c.l.b16 %v44
  %v270 = vunpack.c.l.b16 %v45
  %v271 = vunpack.c.l.b16 %v46
  %v272 = vunpack.c.l.b16 %v47
  %v273 = vunpack.c.l.b16 %v48
  %v274 = vunpack.c.l.b16 %v49
  %v275 = vunpack.c.l.b16 %v50
  %v276 = vunpack.c.l.b16 %v51
  %v277 = vpack.c.b16 %v262, %v261
  %v278 = vpack.c.b16 %v264, %v263
  %v279 = vpack.c.b16 %v266, %v265
  %v280 = vpack.c.b16 %v268, %v267
  %v281 = vpack.c.b16 %v270, %v269
  %v282 = vpack.c.b16 %v272, %v271
  %v283 = vpack.c.b16 %v274, %v273
  %v284 = vpack.c.b16 %v276, %v275
  %293 = vmatpush.bf16.msra.mxu0 %v284
  %294 = vmatpush.bf16.msra.mxu0 %v283
  %295 = vmatpush.bf16.msra.mxu0 %v282
  %296 = vmatpush.bf16.msra.mxu0 %v281
  %297 = vmatpush.bf16.msra.mxu0 %v280
  %298 = vmatpush.bf16.msra.mxu0 %v279
  %299 = vmatpush.bf16.msra.mxu0 %v278
  %300 = vmatpush.bf16.msra.mxu0 %v277
  %301 = vmatmul.bf16.gmra.mxu0 %v214
  %v302 = vpop.f32.mrf.mxu0
  %v303 = vadd.f32 %v241, %v302
  %v304 = vpop.f32.mrf.mxu0
  %v305 = vadd.f32 %v243, %v304
  %306 = vdwg.mxu0
  %307 = vadd.xlane.f32.xlu0 %v303
  %v308 = vpop.xlane.xlu0 %307
  %309 = vadd.xlane.f32.xlu0 %v305
  %v310 = vpop.xlane.xlu0 %309
  %v311 = vmul.f32 %v308, %v169
  %v312 = vmul.f32 %v310, %v169
  %v313 = vsub.f32 %v303, %v311
  %v314 = vsub.f32 %v305, %v312
  %v315 = vmul.f32 %v313, %v313
  %v316 = vmul.f32 %v314, %v314
  %317 = vadd.xlane.f32.xlu0 %v315
  %v318 = vpop.xlane.xlu0 %317
  %319 = vadd.xlane.f32.xlu0 %v316
  %v320 = vpop.xlane.xlu0 %319
  %v321 = vmul.f32 %v318, %v169
  %v322 = vmul.f32 %v320, %v169
  %v323 = vadd.f32 %v321, 1e-05
  %v324 = vadd.f32 %v322, 1e-05
  %v325 = vrsqrt.pop %v323
  %v326 = vmul.f32 %v325, %v323
  %v327 = vmul.f32 %v326, %v325
  %v328 = vmul.f32 0.5, %v327
  %v329 = vsub.f32 1.5, %v328
  %v330 = vmul.f32 %v325, %v329
  %vm331 = vweird.f32 %v323
  %vm332 = vweird.f32 %v325
  %vm333 = vmor %vm331, %vm332
  %v334 = vsel %vm333, %v325, %v330
  %v335 = vrsqrt.pop %v324
  %v336 = vmul.f32 %v335, %v324
  %v337 = vmul.f32 %v336, %v335
  %v338 = vmul.f32 0.5, %v337
  %v339 = vsub.f32 1.5, %v338
  %v340 = vmul.f32 %v335, %v339
  %vm341 = vweird.f32 %v324
  %vm342 = vweird.f32 %v335
  %vm343 = vmor %vm341, %vm342
  %v344 = vsel %vm343, %v335, %v340
  %v345 = vmul.f32 %v313, %v334
  %v346 = vmul.f32 %v314, %v344
  %v347 = vperm.slane %v18, 4
  %v348 = vmul.f32 %v345, %v347
  %v349 = vmul.f32 %v346, %v347
  %v350 = vperm.slane %v18, 5
  %v351 = vadd.f32 %v348, %v350
  %v352 = vadd.f32 %v349, %v350
  %v353 = vmax.f32 %v351, 0.0
  %v354 = vmax.f32 %v352, 0.0
  %v355 = vpack.c.bf16 %v354, %v353
  %v356 = vperm.slane %v18, 6
  %v373 = vunpack.c.l.b16 %v54
  %v374 = vunpack.c.l.b16 %v55
  %v375 = vunpack.c.l.b16 %v56
  %v376 = vunpack.c.l.b16 %v57
  %v377 = vunpack.c.l.b16 %v58
  %v378 = vunpack.c.l.b16 %v59
  %v379 = vunpack.c.l.b16 %v60
  %v380 = vunpack.c.l.b16 %v61
  %v381 = vunpack.c.l.b16 %v62
  %v382 = vunpack.c.l.b16 %v63
  %v383 = vunpack.c.l.b16 %v64
  %v384 = vunpack.c.l.b16 %v65
  %v385 = vunpack.c.l.b16 %v66
  %v386 = vunpack.c.l.b16 %v67
  %v387 = vunpack.c.l.b16 %v68
  %v388 = vunpack.c.l.b16 %v69
  %v389 = vpack.c.b16 %v374, %v373
  %v390 = vpack.c.b16 %v376, %v375
  %v391 = vpack.c.b16 %v378, %v377
  %v392 = vpack.c.b16 %v380, %v379
  %v393 = vpack.c.b16 %v382, %v381
  %v394 = vpack.c.b16 %v384, %v383
  %v395 = vpack.c.b16 %v386, %v385
  %v396 = vpack.c.b16 %v388, %v387
  %405 = vmatpush.bf16.msra.mxu0 %v396
  %406 = vmatpush.bf16.msra.mxu0 %v395
  %407 = vmatpush.bf16.msra.mxu0 %v394
  %408 = vmatpush.bf16.msra.mxu0 %v393
  %409 = vmatpush.bf16.msra.mxu0 %v392
  %410 = vmatpush.bf16.msra.mxu0 %v391
  %411 = vmatpush.bf16.msra.mxu0 %v390
  %412 = vmatpush.bf16.msra.mxu0 %v389
  %413 = vmatmul.bf16.gmra.mxu0 %v355
  %v414 = vpop.f32.mrf.mxu0
  %v415 = vadd.f32 %v356, %v414
  %v416 = vpop.f32.mrf.mxu0
  %v417 = vadd.f32 %v356, %v416
  %418 = vdwg.mxu0
  %419 = vadd.xlane.f32.xlu0 %v415
  %v420 = vpop.xlane.xlu0 %419
  %421 = vadd.xlane.f32.xlu0 %v417
  %v422 = vpop.xlane.xlu0 %421
  %v423 = vmul.f32 %v420, %v169
  %v424 = vmul.f32 %v422, %v169
  %v425 = vsub.f32 %v415, %v423
  %v426 = vsub.f32 %v417, %v424
  %v427 = vmul.f32 %v425, %v425
  %v428 = vmul.f32 %v426, %v426
  %429 = vadd.xlane.f32.xlu0 %v427
  %v430 = vpop.xlane.xlu0 %429
  %431 = vadd.xlane.f32.xlu0 %v428
  %v432 = vpop.xlane.xlu0 %431
  %v433 = vmul.f32 %v430, %v169
  %v434 = vmul.f32 %v432, %v169
  %v435 = vadd.f32 %v433, 1e-05
  %v436 = vadd.f32 %v434, 1e-05
  %v437 = vrsqrt.pop %v435
  %v438 = vmul.f32 %v437, %v435
  %v439 = vmul.f32 %v438, %v437
  %v440 = vmul.f32 0.5, %v439
  %v441 = vsub.f32 1.5, %v440
  %v442 = vmul.f32 %v437, %v441
  %vm443 = vweird.f32 %v435
  %vm444 = vweird.f32 %v437
  %vm445 = vmor %vm443, %vm444
  %v446 = vsel %vm445, %v437, %v442
  %v447 = vrsqrt.pop %v436
  %v448 = vmul.f32 %v447, %v436
  %v449 = vmul.f32 %v448, %v447
  %v450 = vmul.f32 0.5, %v449
  %v451 = vsub.f32 1.5, %v450
  %v452 = vmul.f32 %v447, %v451
  %vm453 = vweird.f32 %v436
  %vm454 = vweird.f32 %v447
  %vm455 = vmor %vm453, %vm454
  %v456 = vsel %vm455, %v447, %v452
  %v457 = vmul.f32 %v425, %v446
  %v458 = vmul.f32 %v426, %v456
  %v459 = vperm.slane %v18, 7
  %v460 = vmul.f32 %v457, %v459
  %v461 = vmul.f32 %v458, %v459
  %v462 = vperm.slane %v19, 0
  %v463 = vadd.f32 %v460, %v462
  %v464 = vadd.f32 %v461, %v462
  %v465 = vmax.f32 %v463, 0.0
  %v466 = vmax.f32 %v464, 0.0
  %v467 = vpack.c.bf16 %v466, %v465
  %v468 = vperm.slane %v19, 1
  %v485 = vunpack.c.l.b16 %v70
  %v486 = vunpack.c.l.b16 %v71
  %v487 = vunpack.c.l.b16 %v72
  %v488 = vunpack.c.l.b16 %v73
  %v489 = vunpack.c.l.b16 %v74
  %v490 = vunpack.c.l.b16 %v75
  %v491 = vunpack.c.l.b16 %v76
  %v492 = vunpack.c.l.b16 %v77
  %v493 = vunpack.c.l.b16 %v78
  %v494 = vunpack.c.l.b16 %v79
  %v495 = vunpack.c.l.b16 %v80
  %v496 = vunpack.c.l.b16 %v81
  %v497 = vunpack.c.l.b16 %v82
  %v498 = vunpack.c.l.b16 %v83
  %v499 = vunpack.c.l.b16 %v84
  %v500 = vunpack.c.l.b16 %v85
  %v501 = vpack.c.b16 %v486, %v485
  %v502 = vpack.c.b16 %v488, %v487
  %v503 = vpack.c.b16 %v490, %v489
  %v504 = vpack.c.b16 %v492, %v491
  %v505 = vpack.c.b16 %v494, %v493
  %v506 = vpack.c.b16 %v496, %v495
  %v507 = vpack.c.b16 %v498, %v497
  %v508 = vpack.c.b16 %v500, %v499
  %517 = vmatpush.bf16.msra.mxu0 %v508
  %518 = vmatpush.bf16.msra.mxu0 %v507
  %519 = vmatpush.bf16.msra.mxu0 %v506
  %520 = vmatpush.bf16.msra.mxu0 %v505
  %521 = vmatpush.bf16.msra.mxu0 %v504
  %522 = vmatpush.bf16.msra.mxu0 %v503
  %523 = vmatpush.bf16.msra.mxu0 %v502
  %524 = vmatpush.bf16.msra.mxu0 %v501
  %525 = vmatmul.bf16.gmra.mxu0 %v467
  %v526 = vpop.f32.mrf.mxu0
  %v527 = vadd.f32 %v468, %v526
  %v528 = vpop.f32.mrf.mxu0
  %v529 = vadd.f32 %v468, %v528
  %530 = vdwg.mxu0
  %v531 = vtanh.pop %v527
  %v532 = vtanh.pop %v529
  %533 = vst [vmem:[%s4] sm:$0xff] %v531
  %534 = vst [vmem:[%s4 + $0x8] sm:$0xff] %v532
  // Predicated region
  $region18: #{actor_forward.1} parent=0 // pred_check
    _
  $region19: #{actor_forward.1} parent=0 // pred_check_branch
    %536 = sbr.rel (0) target = $region21
  $region20: #{actor_forward.1} parent=0 // pred_region
    _
  $region21: #{actor_forward.1} parent=0 // pred_fallthru
    _
  // Predicated region
  $region22: #{actor_forward.1} parent=0 // pred_check
    _
  $region23: #{actor_forward.1} parent=0 // pred_check_branch
    %538 = sbr.rel (0) target = $region25
  $region24: #{actor_forward.1} parent=0 // pred_region
    _
  $region25: #{actor_forward.1} parent=0 // pred_fallthru
    _

</llo_original>
